<compile_context>
chip_gen: v5e
topology: v5e:2x2
jax: 0.10.0
libtpu: 0.0.40
codegen_flags: <defaults>
</compile_context>

<pallas_src>
import functools

import jax
import jax.numpy as jnp
from jax.experimental import pallas as pl
from jax.experimental.pallas import tpu as pltpu

EPS = 1e-5


def conv_bn_kernel(x_ref, w_ref, gb_ref, out_ref, *, width, p_real):
    """Fused Conv(1,3)/pad(0,1) + training-mode BatchNorm.

    x_ref  : (Cin, P_pad)      width-fastest flattening of NCHW input,
                               zero-padded along lanes to a multiple of 128
    w_ref  : (Cout, 3*Cin)     conv weights flattened tap-major, cin-minor
    gb_ref : (Cout, 2)         column 0 = gamma, column 1 = beta
    out_ref: (Cout, P_pad)     NCHW-contiguous output (host slices off the pad)
    """
    x = x_ref[...]                                      # (Cin, P_pad) f32
    _, p_pad = x.shape

    # Position of each flattened element within its image row (static width).
    lane = jax.lax.broadcasted_iota(jnp.int32, x.shape, 1)
    if width & (width - 1) == 0:                        # power-of-two fast path
        wpos = jnp.bitwise_and(lane, width - 1)
    else:
        wpos = lane % width
    pad_lane = lane >= p_real                           # host-padded columns

    # In-kernel "im2col": neighbouring width-columns via XLU roll + boundary
    # masks (padding (0,1) => zeros outside each row of length `width`).  The
    # pad_lane mask keeps the host-padded columns exactly zero so the BN sums
    # below are unaffected.
    x_left = jnp.where((wpos == 0) | pad_lane, 0.0,
                       pltpu.roll(x, 1, 1))                     # x[w-1]
    x_right = jnp.where((wpos == width - 1) | pad_lane, 0.0,
                        pltpu.roll(x, p_pad - 1, 1))            # x[w+1]

    # Single MXU matmul over the stacked taps: (Cout, 3*Cin) @ (3*Cin, P_pad).
    stacked = jnp.concatenate([x_left, x, x_right], axis=0)     # (3*Cin, P_pad)
    y = jnp.dot(w_ref[...], stacked, preferred_element_type=jnp.float32)
    # NOTE: conv bias intentionally omitted - BN's mean-subtraction cancels it.

    # BatchNorm (training mode): one-pass biased stats over the N*H*W real
    # positions per output channel (padded columns of y are exactly 0, so they
    # do not perturb the sums; inv_p uses the real count).
    inv_p = 1.0 / p_real
    mean = jnp.sum(y, axis=1, keepdims=True) * inv_p
    mean_sq = jnp.sum(y * y, axis=1, keepdims=True) * inv_p
    var = mean_sq - mean * mean
    inv_std = jax.lax.rsqrt(var + EPS)

    gamma = gb_ref[:, 0:1]
    beta = gb_ref[:, 1:2]
    scale = gamma * inv_std
    out_ref[...] = y * scale + (beta - mean * scale)


def conv_bn_forward(x_nchw, w_conv, b_conv, gamma, beta):
    """x: (N,Cin,H,W); w_conv: (Cout,Cin,1,KW); b_conv/gamma/beta: (Cout,).

    b_conv is accepted for API parity with the PyTorch module but unused:
    training-mode BatchNorm cancels a per-channel conv bias exactly.
    """
    del b_conv
    N, Cin, H, W = x_nchw.shape
    Cout, Cin2, KH, KW = w_conv.shape
    assert KH == 1 and KW == 3 and Cin2 == Cin
    P = N * H * W
    P_pad = pl.cdiv(P, 128) * 128                       # lane-dense output

    # (N,Cin,H,W) -> (Cin, N*H*W) -> zero-pad lanes to P_pad.
    x2 = jnp.transpose(x_nchw, (1, 0, 2, 3)).reshape(Cin, P).astype(jnp.float32)
    x2 = jnp.pad(x2, ((0, 0), (0, P_pad - P)))
    # Conv weights flattened to (Cout, KW*Cin), tap-major / cin-minor, matching
    # the in-kernel [x_left ; x ; x_right] stacking.  Tiny one-time prep.
    w_flat = jnp.transpose(w_conv[:, :, 0, :], (0, 2, 1)).reshape(
        Cout, KW * Cin).astype(jnp.float32)
    # gamma/beta merged into a single (Cout, 2) input -> one DMA instead of two.
    gb = jnp.stack([gamma, beta], axis=1).astype(jnp.float32)

    full = lambda shape: pl.BlockSpec(shape, lambda: (0,) * len(shape))
    y = pl.pallas_call(
        functools.partial(conv_bn_kernel, width=W, p_real=P),
        out_shape=jax.ShapeDtypeStruct((Cout, P_pad), jnp.float32),
        grid=(),
        in_specs=[full((Cin, P_pad)), full((Cout, KW * Cin)), full((Cout, 2))],
        out_specs=full((Cout, P_pad)),
    )(x2, w_flat, gb)

    # Drop lane padding, then (Cout, N*H*W) -> (N, Cout, H, W).
    # Free bitcast when N == 1.
    return jnp.transpose(y[:, :P].reshape(Cout, N, H, W), (1, 0, 2, 3))


def reference(x_nchw, w_conv, b_conv, gamma, beta):
    """Pure-JAX reference (conv2d + bias + training-mode batchnorm)."""
    y = jax.lax.conv_general_dilated(
        x_nchw, w_conv, window_strides=(1, 1), padding=((0, 0), (1, 1)),
        dimension_numbers=("NCHW", "OIHW", "NCHW"))
    y = y + b_conv.reshape(1, -1, 1, 1)
    mean = jnp.mean(y, axis=(0, 2, 3), keepdims=True)
    var = jnp.mean((y - mean) ** 2, axis=(0, 2, 3), keepdims=True)
    return ((y - mean) * jax.lax.rsqrt(var + EPS)
            * gamma.reshape(1, -1, 1, 1) + beta.reshape(1, -1, 1, 1))


if __name__ == "__main__":
    key = jax.random.PRNGKey(0)
    kx, kw, kb, kg, kbe = jax.random.split(key, 5)

    N, Cin, H, W = 1, 3, 4, 8
    Cout, KH, KW = 16, 1, 3

    x = jax.random.normal(kx, (N, Cin, H, W), dtype=jnp.float32)
    w_conv = jax.random.normal(kw, (Cout, Cin, KH, KW), dtype=jnp.float32) * 0.1
    b_conv = jax.random.normal(kb, (Cout,), dtype=jnp.float32) * 0.1
    gamma = jnp.ones((Cout,), dtype=jnp.float32) + 0.05 * jax.random.normal(
        kg, (Cout,), dtype=jnp.float32)
    beta = 0.05 * jax.random.normal(kbe, (Cout,), dtype=jnp.float32)

    out = conv_bn_forward(x, w_conv, b_conv, gamma, beta)
    out = jax.block_until_ready(out)

    ref = jax.block_until_ready(reference(x, w_conv, b_conv, gamma, beta))
    assert out.shape == (N, Cout, H, W), out.shape
    assert jnp.allclose(out, ref, atol=1e-4, rtol=1e-4), float(
        jnp.max(jnp.abs(out - ref)))

    print("KERNEL_OK")
</pallas_src>

<mosaic_0001>
module attributes {stable_mosaic.version = 11 : i64} {
  func.func @conv_bn_kernel(%arg0: memref<3x128xf32, #tpu.memory_space<vmem>>, %arg1: memref<16x9xf32, #tpu.memory_space<vmem>>, %arg2: memref<16x2xf32, #tpu.memory_space<vmem>>, %arg3: memref<16x128xf32, #tpu.memory_space<vmem>>) attributes {dimension_semantics = [], scalar_prefetch = 0 : i64, scratch_operands = 0 : i64, tpu.core_type = #tpu.core_type<tc>} {
    %c0 = arith.constant 0 : index
    %c0_0 = arith.constant 0 : index
    %0 = vector.load %arg0[%c0, %c0_0] : memref<3x128xf32, #tpu.memory_space<vmem>>, vector<3x128xf32>
    %1 = tpu.iota {dimensions = array<i32: 1>} : vector<3x128xi32>
    %c7_i32 = arith.constant 7 : i32
    %2 = vector.broadcast %c7_i32 : i32 to vector<3x128xi32>
    %3 = arith.andi %1, %2 : vector<3x128xi32>
    %c32_i32 = arith.constant 32 : i32
    %4 = vector.broadcast %c32_i32 : i32 to vector<3x128xi32>
    %5 = arith.cmpi sge, %1, %4 : vector<3x128xi32>
    %c0_i32 = arith.constant 0 : i32
    %6 = vector.broadcast %c0_i32 : i32 to vector<3x128xi32>
    %7 = arith.cmpi eq, %3, %6 : vector<3x128xi32>
    %8 = arith.ori %7, %5 : vector<3x128xi1>
    %c1_i32 = arith.constant 1 : i32
    %9 = tpu.dynamic_rotate %0 by %c1_i32 dim 1 : vector<3x128xf32>, i32 -> vector<3x128xf32>
    %cst = arith.constant 0.000000e+00 : f32
    %10 = vector.broadcast %cst : f32 to vector<3x128xf32>
    %11 = arith.select %8, %10, %9 : vector<3x128xi1>, vector<3x128xf32>
    %c7_i32_1 = arith.constant 7 : i32
    %12 = vector.broadcast %c7_i32_1 : i32 to vector<3x128xi32>
    %13 = arith.cmpi eq, %3, %12 : vector<3x128xi32>
    %14 = arith.ori %13, %5 : vector<3x128xi1>
    %c127_i32 = arith.constant 127 : i32
    %15 = tpu.dynamic_rotate %0 by %c127_i32 dim 1 : vector<3x128xf32>, i32 -> vector<3x128xf32>
    %cst_2 = arith.constant 0.000000e+00 : f32
    %16 = vector.broadcast %cst_2 : f32 to vector<3x128xf32>
    %17 = arith.select %14, %16, %15 : vector<3x128xi1>, vector<3x128xf32>
    %18 = tpu.concatenate %11, %0, %17 in 0 : vector<3x128xf32>, vector<3x128xf32>, vector<3x128xf32> -> vector<9x128xf32>
    %c0_3 = arith.constant 0 : index
    %c0_4 = arith.constant 0 : index
    %19 = vector.load %arg1[%c0_3, %c0_4] : memref<16x9xf32, #tpu.memory_space<vmem>>, vector<16x9xf32>
    %cst_5 = arith.constant dense<0.000000e+00> : vector<16x128xf32>
    %20 = tpu.matmul %19, %18, %cst_5 {dimension_numbers = #tpu.dot_dimension_numbers<[1], [0], [0], [1], [0, 0, 1, 1], [], []>} : vector<16x9xf32>, vector<9x128xf32>, vector<16x128xf32> -> vector<16x128xf32>
    %cst_6 = arith.constant dense<0.000000e+00> : vector<16xf32>
    %21 = vector.multi_reduction <add>, %20, %cst_6 [1] : vector<16x128xf32> to vector<16xf32>
    %22 = vector.shape_cast %21 : vector<16xf32> to vector<16x1xf32>
    %cst_7 = arith.constant 3.125000e-02 : f32
    %23 = vector.broadcast %cst_7 : f32 to vector<16x1xf32>
    %24 = arith.mulf %22, %23 : vector<16x1xf32>
    %25 = arith.mulf %20, %20 : vector<16x128xf32>
    %cst_8 = arith.constant dense<0.000000e+00> : vector<16xf32>
    %26 = vector.multi_reduction <add>, %25, %cst_8 [1] : vector<16x128xf32> to vector<16xf32>
    %27 = vector.shape_cast %26 : vector<16xf32> to vector<16x1xf32>
    %cst_9 = arith.constant 3.125000e-02 : f32
    %28 = vector.broadcast %cst_9 : f32 to vector<16x1xf32>
    %29 = arith.mulf %27, %28 : vector<16x1xf32>
    %30 = arith.mulf %24, %24 : vector<16x1xf32>
    %31 = arith.subf %29, %30 : vector<16x1xf32>
    %cst_10 = arith.constant 9.99999974E-6 : f32
    %32 = vector.broadcast %cst_10 : f32 to vector<16x1xf32>
    %33 = arith.addf %31, %32 : vector<16x1xf32>
    %34 = math.rsqrt %33 : vector<16x1xf32>
    %c0_11 = arith.constant 0 : index
    %c0_12 = arith.constant 0 : index
    %35 = vector.load %arg2[%c0_11, %c0_12] : memref<16x2xf32, #tpu.memory_space<vmem>>, vector<16x1xf32>
    %c0_13 = arith.constant 0 : index
    %c1 = arith.constant 1 : index
    %36 = vector.load %arg2[%c0_13, %c1] : memref<16x2xf32, #tpu.memory_space<vmem>>, vector<16x1xf32>
    %37 = arith.mulf %35, %34 : vector<16x1xf32>
    %38 = vector.broadcast %37 : vector<16x1xf32> to vector<16x128xf32>
    %39 = arith.mulf %20, %38 : vector<16x128xf32>
    %40 = arith.mulf %24, %37 : vector<16x1xf32>
    %41 = arith.subf %36, %40 : vector<16x1xf32>
    %42 = vector.broadcast %41 : vector<16x1xf32> to vector<16x128xf32>
    %43 = arith.addf %39, %42 : vector<16x128xf32>
    %c0_14 = arith.constant 0 : index
    %c0_15 = arith.constant 0 : index
    %44 = vector.load %arg3[%c0_14, %c0_15] : memref<16x128xf32, #tpu.memory_space<vmem>>, vector<16x128xf32>
    tpu.vector_store %arg3[%c0_14, %c0_15], %43 {strides = array<i32>} : memref<16x128xf32, #tpu.memory_space<vmem>>, vector<16x128xf32>,
    return
  }
}

</mosaic_0001>

<llo_original>
// kernel: tpu_custom_call.1
$region0: #{tpu_custom_call.1}
  #allocation0 [shape = 'u32[]', space=smem, size = 0x4, offset = 0x4, fixed_abs, tag = 'smem constant byte address 0x4 - core index']
  #allocation1 [shape = 'u32[72,128]{1,0:T(1,128)}', space=vmem, size = 0x9000, scoped, tag = 'internal scratch']
  %s0 = inlined_call_operand.hbm [shape: f32[3,128], index: 0, kind: input, shape index: {}]
  %s1 = inlined_call_operand.vmem [shape: f32[16,9], index: 1, kind: input, shape index: {}]
  %s2 = inlined_call_operand.vmem [shape: f32[16,2], index: 2, kind: input, shape index: {}]
  %s3 = inlined_call_operand.hbm [shape: f32[16,128], index: 3, kind: output, shape index: {}]
  %s4 = sld [smem:[#allocation0]]
  $region26: #{tpu_custom_call.1} parent=0
    _
  %s6 = ssub.s32 1, %s4
  %s7 = scalar_select 0, %s6, %s4
  $region1: #{tpu_custom_call.1} parent=0
    #allocation2 [shape = 'u8[2048]{0}', space=vmem, size = 0x800, scoped, tag = 'input window, operand 0, single buffered']
    #allocation3 [shape = 's32[1]{0}', space=sflag, size = 0x4, scoped, tag = 'scoped memory for tpu_custom_call.1']
    #allocation4 [shape = 's32[1]{0}', space=sflag, size = 0x4, scoped, tag = 'scoped memory for tpu_custom_call.1']
    #allocation5 [shape = 'u8[8192]{0}', space=vmem, size = 0x2000, scoped, tag = 'output window, operand 0, single buffered']
    %8 = vsyncpa [#allocation3], 0
    %9 = vsyncpa [#allocation4], 0
    // Predicated region
    $region2: #{tpu_custom_call.1} parent=1 // pred_check
      _
    $region3: #{tpu_custom_call.1} parent=1 // pred_check_branch
      %11 = sbr.rel (0) target = $region5
    $region4: #{tpu_custom_call.1} parent=1 // pred_region
      %13 = vsyncadd [#allocation3], 0
      %s15 = sshll.u32 %s0, 4
      %s16 = int_to_ptr.hbm [resolvable:$true] %s15
      %s17 = sshll.u32 [#allocation2], 4
      %s18 = int_to_ptr.vmem [resolvable:$true] %s17
      %20 = dma.hbm_to_vmem [thread:$0]  %s16, 64, %s18, [#allocation3]
    $region5: #{tpu_custom_call.1} parent=1 // pred_fallthru
      _
    // Predicated region
    $region6: #{tpu_custom_call.1} parent=1 // pred_check
      _
    $region7: #{tpu_custom_call.1} parent=1 // pred_check_branch
      %22 = sbr.rel (0) target = $region9
    $region8: #{tpu_custom_call.1} parent=1 // pred_region
      _
    $region9: #{tpu_custom_call.1} parent=1 // pred_fallthru
      _
    // Predicated region
    $region10: #{tpu_custom_call.1} parent=1 // pred_check
      _
    $region11: #{tpu_custom_call.1} parent=1 // pred_check_branch
      %24 = sbr.rel (0) target = $region13
    $region12: #{tpu_custom_call.1} parent=1 // pred_region
      _
    $region13: #{tpu_custom_call.1} parent=1 // pred_fallthru
      _
    // Predicated region
    $region14: #{tpu_custom_call.1} parent=1 // pred_check
      _
    $region15: #{tpu_custom_call.1} parent=1 // pred_check_branch
      %26 = sbr.rel (0) target = $region17
    $region16: #{tpu_custom_call.1} parent=1 // pred_region
      %28 = dma.done [#allocation3], 64
    $region17: #{tpu_custom_call.1} parent=1 // pred_fallthru
      _
    %v29 = vld [vmem:[#allocation2] sm:$0x7]
    %v30 = vlaneseq
    %v31 = vand.u32 %v30, 127
    %v32 = vand.u32 %v31, 7
    %vm33 = vcmp.ge.s32.totalorder %v31, 32
    %vm34 = vcmp.eq.s32.totalorder %v32, 0
    %vm35 = vmor %vm34, %vm33
    %36 = vrot.lane.b32.xlu0 %v29, 1
    %v37 = vpop.permute.xlu0 %36
    %v38 = vsel %vm35, 0.0, %v37
    %vm39 = vcmp.eq.s32.totalorder %v32, 7
    %vm40 = vmor %vm39, %vm33
    %41 = vrot.lane.b32.xlu0 %v29, 127
    %v42 = vpop.permute.xlu0 %41
    %v43 = vsel %vm40, 0.0, %v42
    %v45 = vrot.slane %v29, 5
    %v48 = vrot.slane %v43, 2
    %vm50 = vcmask 1042432
    %v51 = vsel %vm50, %v38, %v45
    %vm52 = vcmask 1045504
    %v53 = vsel %vm52, %v51, %v48
    %v54 = vld [vmem:[%s1] sm:$0xff]
    %v55 = vld [vmem:[%s1 + $0x8] sm:$0xff]
    %vm56 = vcmask 72704
    %v58 = vsel %vm56, %v54, 0
    %v61 = vsel %vm56, %v55, 0
    %vm63 = vcmask 1040384
    %v64 = vsel %vm63, %v48, 0
    %66 = vmatpush.msra.mxu0 0.0
    %67 = vmatpush.msra.mxu0 0.0
    %68 = vmatpush.msra.mxu0 0.0
    %69 = vmatpush.msra.mxu0 0.0
    %70 = vmatpush.msra.mxu0 0.0
    %71 = vmatpush.msra.mxu0 0.0
    %72 = vmatpush.msra.mxu0 0.0
    %73 = vmatpush.msra.mxu0 0.0
    %74 = vmatpush.msra.mxu0 0.0
    %75 = vmatpush.msra.mxu0 0.0
    %76 = vmatpush.msra.mxu0 0.0
    %77 = vmatpush.msra.mxu0 0.0
    %78 = vmatpush.msra.mxu0 0.0
    %79 = vmatpush.msra.mxu0 0.0
    %80 = vmatpush.msra.mxu0 %v64
    %81 = vmatpush.msra.mxu0 %v53
    %82 = vmatmul.f32.gmra.mxu0 %v58
    %v83 = vpop.f32.mrf.mxu0
    %v84 = vadd.f32 0.0, %v83
    %85 = vmatmul.f32.gmra.mxu0 %v61
    %v86 = vpop.f32.mrf.mxu0
    %v87 = vadd.f32 0.0, %v86
    %88 = vdwg.mxu0
    %89 = vadd.xlane.f32.xlu0 %v84
    %v90 = vpop.xlane.xlu0 %89
    %91 = vadd.xlane.f32.xlu0 %v87
    %v92 = vpop.xlane.xlu0 %91
    %v93 = vmul.f32 %v90, 0.03125
    %v94 = vmul.f32 %v92, 0.03125
    %v95 = vmul.f32 %v84, %v84
    %v96 = vmul.f32 %v87, %v87
    %97 = vadd.xlane.f32.xlu0 %v95
    %v98 = vpop.xlane.xlu0 %97
    %99 = vadd.xlane.f32.xlu0 %v96
    %v100 = vpop.xlane.xlu0 %99
    %v101 = vmul.f32 %v98, 0.03125
    %v102 = vmul.f32 %v100, 0.03125
    %v103 = vmul.f32 %v93, %v93
    %v104 = vmul.f32 %v94, %v94
    %v105 = vsub.f32 %v101, %v103
    %v106 = vsub.f32 %v102, %v104
    %v107 = vadd.f32 %v105, 1e-05
    %v108 = vadd.f32 %v106, 1e-05
    %v109 = vrsqrt.pop %v107
    %v110 = vmul.f32 %v109, %v107
    %v111 = vmul.f32 %v110, %v109
    %v112 = vmul.f32 0.5, %v111
    %v113 = vsub.f32 1.5, %v112
    %v114 = vmul.f32 %v109, %v113
    %vm115 = vweird.f32 %v107
    %vm116 = vweird.f32 %v109
    %vm117 = vmor %vm115, %vm116
    %v118 = vsel %vm117, %v109, %v114
    %v119 = vrsqrt.pop %v108
    %v120 = vmul.f32 %v119, %v108
    %v121 = vmul.f32 %v120, %v119
    %v122 = vmul.f32 0.5, %v121
    %v123 = vsub.f32 1.5, %v122
    %v124 = vmul.f32 %v119, %v123
    %vm125 = vweird.f32 %v108
    %vm126 = vweird.f32 %v119
    %vm127 = vmor %vm125, %vm126
    %v128 = vsel %vm127, %v119, %v124
    %v129 = vld [vmem:[%s2] sm:$0xff]
    %v130 = vld [vmem:[%s2 + $0x8] sm:$0xff]
    %v131 = vmul.f32 %v129, %v118
    %v132 = vmul.f32 %v130, %v128
    %134 = vset.pattern.permute.xlu0 0
    %135 = vperm.xlu0 %134, %v131
    %v136 = vpop.permute.xlu0 %135
    %139 = vset.pattern.permute.xlu0 0
    %140 = vperm.xlu0 %139, %v132
    %v141 = vpop.permute.xlu0 %140
    %v143 = vmul.f32 %v84, %v136
    %v144 = vmul.f32 %v87, %v141
    %v145 = vmul.f32 %v93, %v131
    %v146 = vmul.f32 %v94, %v132
    %149 = vrot.lane.b32.xlu0 %v145, 1
    %v150 = vpop.permute.xlu0 %149
    %151 = vrot.lane.b32.xlu0 %v146, 1
    %v152 = vpop.permute.xlu0 %151
    %v155 = vsub.f32 %v129, %v150
    %v156 = vsub.f32 %v130, %v152
    %158 = vset.pattern.permute.xlu0 1
    %159 = vperm.xlu0 %158, %v155
    %v160 = vpop.permute.xlu0 %159
    %163 = vset.pattern.permute.xlu0 1
    %164 = vperm.xlu0 %163, %v156
    %v165 = vpop.permute.xlu0 %164
    %v167 = vadd.f32 %v143, %v160
    %v168 = vadd.f32 %v144, %v165
    %169 = vst [vmem:[#allocation5] sm:$0xff] %v167
    %170 = vst [vmem:[#allocation5 + $0x8] sm:$0xff] %v168
    // Predicated region
    $region18: #{tpu_custom_call.1} parent=1 // pred_check
      _
    $region19: #{tpu_custom_call.1} parent=1 // pred_check_branch
      %172 = sbr.rel (0) target = $region21
    $region20: #{tpu_custom_call.1} parent=1 // pred_region
      %174 = vsyncadd [#allocation4], 0
      %s175 = sshll.u32 [#allocation5], 4
      %s176 = int_to_ptr.vmem [resolvable:$true] %s175
      %s177 = sshll.u32 %s3, 4
      %s178 = int_to_ptr.hbm [resolvable:$true] %s177
      %183 = dma.vmem_to_hbm [thread:$0]  %s176, 256, %s178, [#allocation4], 128, 128, 8
    $region21: #{tpu_custom_call.1} parent=1 // pred_fallthru
      _
    // Predicated region
    $region22: #{tpu_custom_call.1} parent=1 // pred_check
      _
    $region23: #{tpu_custom_call.1} parent=1 // pred_check_branch
      %185 = sbr.rel (0) target = $region25
    $region24: #{tpu_custom_call.1} parent=1 // pred_region
      %187 = dma.done [#allocation4], 256
    $region25: #{tpu_custom_call.1} parent=1 // pred_fallthru
      _
    %188 = vsyncpa [#allocation3], 1
    %189 = vsyncpa [#allocation4], 1

</llo_original>
